<compile_context>
chip_gen: v6e
topology: v6e:2x2x1
jax: 0.10.0
libtpu: 0.0.40
codegen_flags: <defaults>
</compile_context>

<pallas_src>
import jax
import jax.numpy as jnp
from jax.experimental import pallas as pl
from jax.experimental.pallas import tpu as pltpu

HIDDEN = 128
DEFAULT_BATCH_TILE = 2048          # per-grid-step overhead ~0.35us; big tiles amortize it
VMEM_X_TILE_BUDGET = 4 << 20       # keep double-buffered f32 x tile under ~4 MiB (v5e-safe)
VMEM_LIMIT_BYTES = 32 * 1024 * 1024  # <= physical / scoped-raise-able on v5e/v6e/v7x


def _round_up(n, m):
    return (n + m - 1) // m * m


def qnet_kernel(x_ref, w1_ref, b1_ref, w2_ref, b2_ref, w3_ref, b3_ref, o_ref):
    # Three MXU matmuls (bf16 operands, f32 accumulate) + VPU bias-add / ReLU in f32.
    x = x_ref[...].astype(jnp.bfloat16)                                   # f32 load, VPU cast
    h1 = jnp.dot(x, w1_ref[...], preferred_element_type=jnp.float32) + b1_ref[...]
    h1 = jnp.maximum(h1, 0.0)
    h2 = jnp.dot(h1.astype(jnp.bfloat16), w2_ref[...],
                 preferred_element_type=jnp.float32) + b2_ref[...]
    h2 = jnp.maximum(h2, 0.0)
    # Unpadded (tb, action_dim) store: tiny write traffic; masked vst is fine (vst slot has slack).
    o_ref[...] = jnp.dot(h2.astype(jnp.bfloat16), w3_ref[...],
                         preferred_element_type=jnp.float32) + b3_ref[...]


def prepare_params(params):
    """One-time conversion: bf16 weights for the MXU, f32 biases for the VPU.

    Do this once (e.g. after every target-network sync), not on every forward.
    """
    return {
        "w1": params["w1"].astype(jnp.bfloat16), "b1": params["b1"].astype(jnp.float32),
        "w2": params["w2"].astype(jnp.bfloat16), "b2": params["b2"].astype(jnp.float32),
        "w3": params["w3"].astype(jnp.bfloat16), "b3": params["b3"].astype(jnp.float32),
    }


@jax.jit
def qnetwork_forward(x, prepared):
    """Pallas forward pass for QNetwork.

    x: (B, obs_dim) any float dtype -> cast to float32 (mirrors x.float() in the PyTorch module)
    prepared: output of prepare_params(); weights (in, out) bf16, biases (1, out) f32
    returns: (B, action_dim) float32 Q-values
    """
    x = jnp.asarray(x, jnp.float32)
    B, obs_dim = x.shape
    w1, b1 = prepared["w1"], prepared["b1"]
    w2, b2 = prepared["w2"], prepared["b2"]
    w3, b3 = prepared["w3"], prepared["b3"]
    action_dim = w3.shape[1]

    # Batch tile: large (amortize grid-step overhead), 16-row aligned (bf16 sublane packing),
    # capped at ~ceil(B/2) so v7x gets >=2 grid steps, and capped so the double-buffered f32
    # x tile stays within a small VMEM budget even for large obs_dim.
    half = _round_up(pl.cdiv(B, 2), 16)
    tb = max(16, min(DEFAULT_BATCH_TILE, half))
    max_tb_for_vmem = max(16, (VMEM_X_TILE_BUDGET // (2 * 4 * max(obs_dim, 1))) // 16 * 16)
    tb = min(tb, max_tb_for_vmem)
    grid = (pl.cdiv(B, tb),)

    # Weights/biases: whole-array blocks with constant index_map -> DMA'd once, VMEM-resident.
    resident = lambda shape: pl.BlockSpec(shape, lambda i: (0, 0))

    flops = 2 * B * (obs_dim * HIDDEN + HIDDEN * HIDDEN + HIDDEN * action_dim)
    bytes_accessed = (
        4 * B * obs_dim                                                    # f32 x read
        + 2 * (obs_dim * HIDDEN + HIDDEN * HIDDEN + HIDDEN * action_dim)  # bf16 weights
        + 4 * (2 * HIDDEN + action_dim)                                    # f32 biases
        + 4 * B * action_dim                                               # f32 output write
    )

    out = pl.pallas_call(
        qnet_kernel,
        out_shape=jax.ShapeDtypeStruct((B, action_dim), jnp.float32),
        grid=grid,
        in_specs=[
            pl.BlockSpec((tb, obs_dim), lambda i: (i, 0)),                 # streamed per tile
            resident((obs_dim, HIDDEN)), resident((1, HIDDEN)),            # layer 1 (resident)
            resident((HIDDEN, HIDDEN)), resident((1, HIDDEN)),             # layer 2 (resident)
            resident((HIDDEN, action_dim)), resident((1, action_dim)),     # layer 3 (resident)
        ],
        out_specs=pl.BlockSpec((tb, action_dim), lambda i: (i, 0)),
        compiler_params=pltpu.CompilerParams(
            dimension_semantics=("parallel",),
            vmem_limit_bytes=VMEM_LIMIT_BYTES),
        cost_estimate=pl.CostEstimate(
            flops=flops, transcendentals=0, bytes_accessed=bytes_accessed),
    )(x, w1, b1, w2, b2, w3, b3)

    return out


def init_params(key, obs_dim, action_dim):
    """Deterministic init mirroring PyTorch nn.Linear default U(-1/sqrt(fan_in), +1/sqrt(fan_in))."""
    ks = jax.random.split(key, 6)

    def linear(kw, kb, fan_in, fan_out):
        bound = 1.0 / jnp.sqrt(jnp.float32(fan_in))
        w = jax.random.uniform(kw, (fan_in, fan_out), jnp.float32, -bound, bound)
        b = jax.random.uniform(kb, (1, fan_out), jnp.float32, -bound, bound)
        return w, b

    w1, b1 = linear(ks[0], ks[1], obs_dim, HIDDEN)
    w2, b2 = linear(ks[2], ks[3], HIDDEN, HIDDEN)
    w3, b3 = linear(ks[4], ks[5], HIDDEN, action_dim)
    return {"w1": w1, "b1": b1, "w2": w2, "b2": b2, "w3": w3, "b3": b3}


if __name__ == "__main__":
    key = jax.random.PRNGKey(0)
    k_params, k_x = jax.random.split(key)

    obs_dim, action_dim, batch = 8, 4, 8
    params = init_params(k_params, obs_dim, action_dim)
    prepared = prepare_params(params)
    x = jax.random.normal(k_x, (batch, obs_dim), jnp.float32)

    q_values = qnetwork_forward(x, prepared)
    jax.block_until_ready(q_values)
    assert q_values.shape == (batch, action_dim)

    # Reference 1: full-f32 math (PyTorch semantics) — loose tolerance due to bf16 MXU operands.
    h1 = jnp.maximum(x @ params["w1"] + params["b1"], 0.0)
    h2 = jnp.maximum(h1 @ params["w2"] + params["b2"], 0.0)
    ref_f32 = h2 @ params["w3"] + params["b3"]
    assert jnp.allclose(q_values, ref_f32, atol=5e-2, rtol=5e-2)

    # Reference 2: identical bf16-operand / f32-accumulate math — tight tolerance.
    def _dot(a, w):
        return jnp.dot(a.astype(jnp.bfloat16), w.astype(jnp.bfloat16),
                       preferred_element_type=jnp.float32)

    r1 = jnp.maximum(_dot(x, params["w1"]) + params["b1"], 0.0)
    r2 = jnp.maximum(_dot(r1, params["w2"]) + params["b2"], 0.0)
    ref_bf16 = _dot(r2, params["w3"]) + params["b3"]
    assert jnp.allclose(q_values, ref_bf16, atol=2e-3, rtol=2e-3)

    print("KERNEL_OK")
</pallas_src>

<mosaic_0001>
module attributes {stable_mosaic.version = 11 : i64} {
  func.func @qnet_kernel(%arg0: i32, %arg1: memref<16x8xf32, #tpu.memory_space<vmem>>, %arg2: memref<8x128xbf16, #tpu.memory_space<vmem>>, %arg3: memref<1x128xf32, #tpu.memory_space<vmem>>, %arg4: memref<128x128xbf16, #tpu.memory_space<vmem>>, %arg5: memref<1x128xf32, #tpu.memory_space<vmem>>, %arg6: memref<128x4xbf16, #tpu.memory_space<vmem>>, %arg7: memref<1x4xf32, #tpu.memory_space<vmem>>, %arg8: memref<16x4xf32, #tpu.memory_space<vmem>>) attributes {dimension_semantics = [#tpu.dimension_semantics<parallel>], iteration_bounds = array<i64: 1>, scalar_prefetch = 0 : i64, scratch_operands = 0 : i64, tpu.core_type = #tpu.core_type<tc>, window_params = [{transform_indices = @transform_0, window_bounds = array<i64: 16, 8>}, {pipeline_mode = #tpu.pipeline_mode<synchronous>, transform_indices = @transform_1, window_bounds = array<i64: 8, 128>}, {pipeline_mode = #tpu.pipeline_mode<synchronous>, transform_indices = @transform_2, window_bounds = array<i64: 1, 128>}, {pipeline_mode = #tpu.pipeline_mode<synchronous>, transform_indices = @transform_3, window_bounds = array<i64: 128, 128>}, {pipeline_mode = #tpu.pipeline_mode<synchronous>, transform_indices = @transform_4, window_bounds = array<i64: 1, 128>}, {pipeline_mode = #tpu.pipeline_mode<synchronous>, transform_indices = @transform_5, window_bounds = array<i64: 128, 4>}, {pipeline_mode = #tpu.pipeline_mode<synchronous>, transform_indices = @transform_6, window_bounds = array<i64: 1, 4>}, {transform_indices = @transform_7, window_bounds = array<i64: 16, 4>}]} {
    %c0 = arith.constant 0 : index
    %c0_0 = arith.constant 0 : index
    %0 = vector.load %arg1[%c0, %c0_0] : memref<16x8xf32, #tpu.memory_space<vmem>>, vector<16x8xf32>
    %1 = arith.truncf %0 : vector<16x8xf32> to vector<16x8xbf16>
    %c0_1 = arith.constant 0 : index
    %c0_2 = arith.constant 0 : index
    %2 = vector.load %arg2[%c0_1, %c0_2] : memref<8x128xbf16, #tpu.memory_space<vmem>>, vector<8x128xbf16>
    %cst = arith.constant dense<0.000000e+00> : vector<16x128xf32>
    %3 = tpu.matmul %1, %2, %cst {dimension_numbers = #tpu.dot_dimension_numbers<[1], [0], [0], [1], [0, 0, 1, 1], [], []>} : vector<16x8xbf16>, vector<8x128xbf16>, vector<16x128xf32> -> vector<16x128xf32>
    %c0_3 = arith.constant 0 : index
    %c0_4 = arith.constant 0 : index
    %4 = vector.load %arg3[%c0_3, %c0_4] : memref<1x128xf32, #tpu.memory_space<vmem>>, vector<1x128xf32>
    %5 = vector.broadcast %4 : vector<1x128xf32> to vector<16x128xf32>
    %6 = arith.addf %3, %5 : vector<16x128xf32>
    %cst_5 = arith.constant 0.000000e+00 : f32
    %7 = vector.broadcast %cst_5 : f32 to vector<16x128xf32>
    %8 = arith.maximumf %6, %7 : vector<16x128xf32>
    %9 = arith.truncf %8 : vector<16x128xf32> to vector<16x128xbf16>
    %c0_6 = arith.constant 0 : index
    %c0_7 = arith.constant 0 : index
    %10 = vector.load %arg4[%c0_6, %c0_7] : memref<128x128xbf16, #tpu.memory_space<vmem>>, vector<128x128xbf16>
    %cst_8 = arith.constant dense<0.000000e+00> : vector<16x128xf32>
    %11 = tpu.matmul %9, %10, %cst_8 {dimension_numbers = #tpu.dot_dimension_numbers<[1], [0], [0], [1], [0, 0, 1, 1], [], []>} : vector<16x128xbf16>, vector<128x128xbf16>, vector<16x128xf32> -> vector<16x128xf32>
    %c0_9 = arith.constant 0 : index
    %c0_10 = arith.constant 0 : index
    %12 = vector.load %arg5[%c0_9, %c0_10] : memref<1x128xf32, #tpu.memory_space<vmem>>, vector<1x128xf32>
    %13 = vector.broadcast %12 : vector<1x128xf32> to vector<16x128xf32>
    %14 = arith.addf %11, %13 : vector<16x128xf32>
    %cst_11 = arith.constant 0.000000e+00 : f32
    %15 = vector.broadcast %cst_11 : f32 to vector<16x128xf32>
    %16 = arith.maximumf %14, %15 : vector<16x128xf32>
    %17 = arith.truncf %16 : vector<16x128xf32> to vector<16x128xbf16>
    %c0_12 = arith.constant 0 : index
    %c0_13 = arith.constant 0 : index
    %18 = vector.load %arg6[%c0_12, %c0_13] : memref<128x4xbf16, #tpu.memory_space<vmem>>, vector<128x4xbf16>
    %cst_14 = arith.constant dense<0.000000e+00> : vector<16x4xf32>
    %19 = tpu.matmul %17, %18, %cst_14 {dimension_numbers = #tpu.dot_dimension_numbers<[1], [0], [0], [1], [0, 0, 1, 1], [], []>} : vector<16x128xbf16>, vector<128x4xbf16>, vector<16x4xf32> -> vector<16x4xf32>
    %c0_15 = arith.constant 0 : index
    %c0_16 = arith.constant 0 : index
    %20 = vector.load %arg7[%c0_15, %c0_16] : memref<1x4xf32, #tpu.memory_space<vmem>>, vector<1x4xf32>
    %21 = vector.broadcast %20 : vector<1x4xf32> to vector<16x4xf32>
    %22 = arith.addf %19, %21 : vector<16x4xf32>
    %c0_17 = arith.constant 0 : index
    %c0_18 = arith.constant 0 : index
    %23 = vector.load %arg8[%c0_17, %c0_18] : memref<16x4xf32, #tpu.memory_space<vmem>>, vector<16x4xf32>
    tpu.vector_store %arg8[%c0_17, %c0_18], %22 {strides = array<i32>} : memref<16x4xf32, #tpu.memory_space<vmem>>, vector<16x4xf32>,
    return
  }
  func.func @transform_0(%arg0: i32) -> (i32, i32) {
    %c0_i32 = arith.constant 0 : i32
    %c0_i32_0 = arith.constant 0 : i32
    return %arg0, %c0_i32 : i32, i32
  }
  func.func @transform_1(%arg0: i32) -> (i32, i32) {
    %c0_i32 = arith.constant 0 : i32
    %c0_i32_0 = arith.constant 0 : i32
    %c0_i32_1 = arith.constant 0 : i32
    return %c0_i32, %c0_i32_0 : i32, i32
  }
  func.func @transform_2(%arg0: i32) -> (i32, i32) {
    %c0_i32 = arith.constant 0 : i32
    %c0_i32_0 = arith.constant 0 : i32
    %c0_i32_1 = arith.constant 0 : i32
    return %c0_i32, %c0_i32_0 : i32, i32
  }
  func.func @transform_3(%arg0: i32) -> (i32, i32) {
    %c0_i32 = arith.constant 0 : i32
    %c0_i32_0 = arith.constant 0 : i32
    %c0_i32_1 = arith.constant 0 : i32
    return %c0_i32, %c0_i32_0 : i32, i32
  }
  func.func @transform_4(%arg0: i32) -> (i32, i32) {
    %c0_i32 = arith.constant 0 : i32
    %c0_i32_0 = arith.constant 0 : i32
    %c0_i32_1 = arith.constant 0 : i32
    return %c0_i32, %c0_i32_0 : i32, i32
  }
  func.func @transform_5(%arg0: i32) -> (i32, i32) {
    %c0_i32 = arith.constant 0 : i32
    %c0_i32_0 = arith.constant 0 : i32
    %c0_i32_1 = arith.constant 0 : i32
    return %c0_i32, %c0_i32_0 : i32, i32
  }
  func.func @transform_6(%arg0: i32) -> (i32, i32) {
    %c0_i32 = arith.constant 0 : i32
    %c0_i32_0 = arith.constant 0 : i32
    %c0_i32_1 = arith.constant 0 : i32
    return %c0_i32, %c0_i32_0 : i32, i32
  }
  func.func @transform_7(%arg0: i32) -> (i32, i32) {
    %c0_i32 = arith.constant 0 : i32
    %c0_i32_0 = arith.constant 0 : i32
    return %arg0, %c0_i32 : i32, i32
  }
}

</mosaic_0001>

<llo_original>
// kernel: qnetwork_forward.1
$region0: #{qnetwork_forward.1}
  #allocation0 [shape = 'u32[]', space=smem, size = 0x4, offset = 0x4, fixed_abs, tag = 'smem constant byte address 0x4 - core index']
  #allocation1 [shape = 'u32[144,128]{1,0:T(1,128)}', space=vmem, size = 0x12000, scoped, tag = 'internal scratch']
  %s0 = inlined_call_operand.vmem [shape: f32[8,8], index: 0, kind: input, shape index: {}]
  %s1 = inlined_call_operand.hbm [shape: bf16[8,128], index: 1, kind: input, shape index: {}]
  %s2 = inlined_call_operand.vmem [shape: f32[1,128], index: 2, kind: input, shape index: {}]
  %s3 = inlined_call_operand.vmem [shape: bf16[128,128], index: 3, kind: input, shape index: {}]
  %s4 = inlined_call_operand.vmem [shape: f32[1,128], index: 4, kind: input, shape index: {}]
  %s5 = inlined_call_operand.vmem [shape: bf16[128,4], index: 5, kind: input, shape index: {}]
  %s6 = inlined_call_operand.hbm [shape: f32[1,4], index: 6, kind: input, shape index: {}]
  %s7 = inlined_call_operand.vmem [shape: f32[8,4], index: 7, kind: output, shape index: {}]
  %s8 = sld [smem:[#allocation0]]
  $region80: #{qnetwork_forward.1} parent=0
    _
  %s10 = ssub.s32 1, %s8
  %s11 = scalar_select 0, %s10, %s8
  $region1: #{qnetwork_forward.1} parent=0
    #allocation2 [shape = 'u8[2048]{0}', space=vmem, size = 0x800, scoped, tag = 'input window, operand 1, single buffered']
    #allocation3 [shape = 's32[1]{0}', space=sflag, size = 0x4, scoped, tag = 'scoped memory for qnetwork_forward.1']
    #allocation4 [shape = 'u8[512]{0}', space=vmem, size = 0x400, scoped, tag = 'input window, operand 6, single buffered']
    #allocation5 [shape = 's32[1]{0}', space=sflag, size = 0x4, scoped, tag = 'scoped memory for qnetwork_forward.1']
    #allocation6 [shape = 'u8[8192]{0}', space=vmem, size = 0x2000, scoped, tag = 'output window, operand 0, single buffered']
    %12 = vsyncpa [#allocation3], 0
    %13 = vsyncpa [#allocation5], 0
    // Predicated region
    $region2: #{qnetwork_forward.1} parent=1 // pred_check
      _
    $region3: #{qnetwork_forward.1} parent=1 // pred_check_branch
      %15 = sbr.rel (0) target = $region5
    $region4: #{qnetwork_forward.1} parent=1 // pred_region
      _
    $region5: #{qnetwork_forward.1} parent=1 // pred_fallthru
      _
    // Predicated region
    $region6: #{qnetwork_forward.1} parent=1 // pred_check
      _
    $region7: #{qnetwork_forward.1} parent=1 // pred_check_branch
      %17 = sbr.rel (0) target = $region9
    $region8: #{qnetwork_forward.1} parent=1 // pred_region
      %s19 = ssub.s32 64, 64
      %20 = vsyncadd [#allocation3], %s19
      %s22 = sshll.u32 [#allocation2], 4
      %s23 = int_to_ptr.vmem [resolvable:$true] %s22
      %25 = dma.hbm_to_vmem [thread:$0]  %s1, 64, %s23, [#allocation3]
    $region9: #{qnetwork_forward.1} parent=1 // pred_fallthru
      _
    // Predicated region
    $region10: #{qnetwork_forward.1} parent=1 // pred_check
      _
    $region11: #{qnetwork_forward.1} parent=1 // pred_check_branch
      %27 = sbr.rel (0) target = $region13
    $region12: #{qnetwork_forward.1} parent=1 // pred_region
      _
    $region13: #{qnetwork_forward.1} parent=1 // pred_fallthru
      _
    // Predicated region
    $region14: #{qnetwork_forward.1} parent=1 // pred_check
      _
    $region15: #{qnetwork_forward.1} parent=1 // pred_check_branch
      %29 = sbr.rel (0) target = $region17
    $region16: #{qnetwork_forward.1} parent=1 // pred_region
      _
    $region17: #{qnetwork_forward.1} parent=1 // pred_fallthru
      _
    // Predicated region
    $region18: #{qnetwork_forward.1} parent=1 // pred_check
      _
    $region19: #{qnetwork_forward.1} parent=1 // pred_check_branch
      %31 = sbr.rel (0) target = $region21
    $region20: #{qnetwork_forward.1} parent=1 // pred_region
      _
    $region21: #{qnetwork_forward.1} parent=1 // pred_fallthru
      _
    // Predicated region
    $region22: #{qnetwork_forward.1} parent=1 // pred_check
      _
    $region23: #{qnetwork_forward.1} parent=1 // pred_check_branch
      %33 = sbr.rel (0) target = $region25
    $region24: #{qnetwork_forward.1} parent=1 // pred_region
      _
    $region25: #{qnetwork_forward.1} parent=1 // pred_fallthru
      _
    // Predicated region
    $region26: #{qnetwork_forward.1} parent=1 // pred_check
      _
    $region27: #{qnetwork_forward.1} parent=1 // pred_check_branch
      %35 = sbr.rel (0) target = $region29
    $region28: #{qnetwork_forward.1} parent=1 // pred_region
      %s37 = ssub.s32 16, 16
      %38 = vsyncadd [#allocation5], %s37
      %s40 = sshll.u32 [#allocation4], 4
      %s41 = int_to_ptr.vmem [resolvable:$true] %s40
      %43 = dma.hbm_to_vmem [thread:$0]  %s6, 16, %s41, [#allocation5]
    $region29: #{qnetwork_forward.1} parent=1 // pred_fallthru
      _
    // Predicated region
    $region30: #{qnetwork_forward.1} parent=1 // pred_check
      _
    $region31: #{qnetwork_forward.1} parent=1 // pred_check_branch
      %45 = sbr.rel (0) target = $region33
    $region32: #{qnetwork_forward.1} parent=1 // pred_region
      %46 = dma.done [#allocation3], 64
    $region33: #{qnetwork_forward.1} parent=1 // pred_fallthru
      _
    // Predicated region
    $region34: #{qnetwork_forward.1} parent=1 // pred_check
      _
    $region35: #{qnetwork_forward.1} parent=1 // pred_check_branch
      %48 = sbr.rel (0) target = $region37
    $region36: #{qnetwork_forward.1} parent=1 // pred_region
      %49 = dma.done [#allocation5], 16
    $region37: #{qnetwork_forward.1} parent=1 // pred_fallthru
      _
    %v51 = vld [vmem:[%s0] sm:$0xff]
    %v52 = vld [vmem:[%s0 + $0x8] sm:$0xff]
    %v53 = vpack.c.bf16 %v52, %v51
    %v54 = vld [vmem:[#allocation2] sm:$0xf]
    %v55 = vld [vmem:[%s2] sm:$0x1]
    %v57 = vlaneseq
    %v58 = vshrl.u32 %v57, 7
    %v59 = vsub.s32 0, %v58
    %v60 = vrot.slane %v55, %v59
    %vm62 = vcmask 64512
    %v64 = vsel %vm62, %v53, 0
    %vm66 = vcmask 1043456
    %v68 = vsel %vm66, %v54, 0
    %70 = vmatprep.subr.bf16.mxu0 0
    %71 = vmatpush1.bf16.msra.mxu0 0
    %72 = vmatprep.subr.bf16.mxu0 0
    %73 = vmatpush1.bf16.msra.mxu0 0
    %74 = vmatprep.subr.bf16.mxu0 0
    %75 = vmatpush1.bf16.msra.mxu0 0
    %76 = vmatprep.subr.bf16.mxu0 0
    %77 = vmatpush1.bf16.msra.mxu0 0
    %78 = vmatprep.subr.bf16.mxu0 0
    %79 = vmatpush1.bf16.msra.mxu0 0
    %80 = vmatprep.subr.bf16.mxu0 0
    %81 = vmatpush1.bf16.msra.mxu0 0
    %82 = vmatprep.subr.bf16.mxu0 0
    %83 = vmatpush1.bf16.msra.mxu0 0
    %84 = vmatprep.subr.bf16.mxu0 0
    %85 = vmatpush1.bf16.msra.mxu0 %v68
    %86 = vmatprep.subr.bf16.mxu0 0
    %87 = vmatpush2.bf16.msra.mxu0 0
    %88 = vmatprep.subr.bf16.mxu0 0
    %89 = vmatpush2.bf16.msra.mxu0 0
    %90 = vmatprep.subr.bf16.mxu0 0
    %91 = vmatpush2.bf16.msra.mxu0 0
    %92 = vmatprep.subr.bf16.mxu0 0
    %93 = vmatpush2.bf16.msra.mxu0 0
    %94 = vmatprep.subr.bf16.mxu0 0
    %95 = vmatpush2.bf16.msra.mxu0 0
    %96 = vmatprep.subr.bf16.mxu0 0
    %97 = vmatpush2.bf16.msra.mxu0 0
    %98 = vmatprep.subr.bf16.mxu0 0
    %99 = vmatpush2.bf16.msra.mxu0 0
    %100 = vmatprep.subr.bf16.mxu0 0
    %101 = vmatpush2.bf16.msra.mxu0 0
    %102 = vmatprep.mubr.bf16.mxu0 0
    %103 = vmatmul.mubr.bf16.gmra.mxu0 %v64
    %v104 = vpop.f32.mrf.mxu0
    %v105 = vadd.f32 %v60, %v104
    %v106 = vpop.f32.mrf.mxu0
    %v107 = vpop.f32.mrf.mxu0
    %v108 = vadd.f32 %v60, %v107
    %v109 = vpop.f32.mrf.mxu0
    %110 = vdwg.mxu0
    %v111 = vmax.f32 %v105, 0.0
    %v112 = vmax.f32 %v108, 0.0
    %v113 = vpack.c.bf16 %v112, %v111
    %v114 = vld [vmem:[%s3] sm:$0xf]
    %v115 = vld [vmem:[%s3 + $0x4] sm:$0xf]
    %v116 = vld [vmem:[%s3 + $0x8] sm:$0xf]
    %v117 = vld [vmem:[%s3 + $0xc] sm:$0xf]
    %v118 = vld [vmem:[%s3 + $0x10] sm:$0xf]
    %v119 = vld [vmem:[%s3 + $0x14] sm:$0xf]
    %v120 = vld [vmem:[%s3 + $0x18] sm:$0xf]
    %v121 = vld [vmem:[%s3 + $0x1c] sm:$0xf]
    %v122 = vld [vmem:[%s3 + $0x20] sm:$0xf]
    %v123 = vld [vmem:[%s3 + $0x24] sm:$0xf]
    %v124 = vld [vmem:[%s3 + $0x28] sm:$0xf]
    %v125 = vld [vmem:[%s3 + $0x2c] sm:$0xf]
    %v126 = vld [vmem:[%s3 + $0x30] sm:$0xf]
    %v127 = vld [vmem:[%s3 + $0x34] sm:$0xf]
    %v128 = vld [vmem:[%s3 + $0x38] sm:$0xf]
    %v129 = vld [vmem:[%s3 + $0x3c] sm:$0xf]
    %v130 = vld [vmem:[%s4] sm:$0x1]
    %v132 = vlaneseq
    %v133 = vshrl.u32 %v132, 7
    %v134 = vsub.s32 0, %v133
    %v135 = vrot.slane %v130, %v134
    %v153 = vunpack.c.l.b16 %v114
    %v154 = vunpack.c.l.b16 %v115
    %v155 = vunpack.c.l.b16 %v116
    %v156 = vunpack.c.l.b16 %v117
    %v157 = vunpack.c.l.b16 %v118
    %v158 = vunpack.c.l.b16 %v119
    %v159 = vunpack.c.l.b16 %v120
    %v160 = vunpack.c.l.b16 %v121
    %v161 = vunpack.c.l.b16 %v122
    %v162 = vunpack.c.l.b16 %v123
    %v163 = vunpack.c.l.b16 %v124
    %v164 = vunpack.c.l.b16 %v125
    %v165 = vunpack.c.l.b16 %v126
    %v166 = vunpack.c.l.b16 %v127
    %v167 = vunpack.c.l.b16 %v128
    %v168 = vunpack.c.l.b16 %v129
    %v169 = vpack.c.b16 %v154, %v153
    %v170 = vpack.c.b16 %v156, %v155
    %v171 = vpack.c.b16 %v158, %v157
    %v172 = vpack.c.b16 %v160, %v159
    %v173 = vpack.c.b16 %v162, %v161
    %v174 = vpack.c.b16 %v164, %v163
    %v175 = vpack.c.b16 %v166, %v165
    %v176 = vpack.c.b16 %v168, %v167
    %185 = vmatprep.subr.bf16.mxu0 0
    %186 = vmatpush1.bf16.msra.mxu0 %v176
    %187 = vmatprep.subr.bf16.mxu0 0
    %188 = vmatpush1.bf16.msra.mxu0 %v175
    %189 = vmatprep.subr.bf16.mxu0 0
    %190 = vmatpush1.bf16.msra.mxu0 %v174
    %191 = vmatprep.subr.bf16.mxu0 0
    %192 = vmatpush1.bf16.msra.mxu0 %v173
    %193 = vmatprep.subr.bf16.mxu0 0
    %194 = vmatpush1.bf16.msra.mxu0 %v172
    %195 = vmatprep.subr.bf16.mxu0 0
    %196 = vmatpush1.bf16.msra.mxu0 %v171
    %197 = vmatprep.subr.bf16.mxu0 0
    %198 = vmatpush1.bf16.msra.mxu0 %v170
    %199 = vmatprep.subr.bf16.mxu0 0
    %200 = vmatpush1.bf16.msra.mxu0 %v169
    %201 = vmatprep.subr.bf16.mxu0 0
    %202 = vmatpush2.bf16.msra.mxu0 0
    %203 = vmatprep.subr.bf16.mxu0 0
    %204 = vmatpush2.bf16.msra.mxu0 0
    %205 = vmatprep.subr.bf16.mxu0 0
    %206 = vmatpush2.bf16.msra.mxu0 0
    %207 = vmatprep.subr.bf16.mxu0 0
    %208 = vmatpush2.bf16.msra.mxu0 0
    %209 = vmatprep.subr.bf16.mxu0 0
    %210 = vmatpush2.bf16.msra.mxu0 0
    %211 = vmatprep.subr.bf16.mxu0 0
    %212 = vmatpush2.bf16.msra.mxu0 0
    %213 = vmatprep.subr.bf16.mxu0 0
    %214 = vmatpush2.bf16.msra.mxu0 0
    %215 = vmatprep.subr.bf16.mxu0 0
    %216 = vmatpush2.bf16.msra.mxu0 0
    %217 = vmatprep.mubr.bf16.mxu0 0
    %218 = vmatmul.mubr.bf16.gmra.mxu0 %v113
    %v219 = vpop.f32.mrf.mxu0
    %v220 = vadd.f32 %v135, %v219
    %v221 = vpop.f32.mrf.mxu0
    %v222 = vpop.f32.mrf.mxu0
    %v223 = vadd.f32 %v135, %v222
    %v224 = vpop.f32.mrf.mxu0
    %225 = vdwg.mxu0
    %v226 = vmax.f32 %v220, 0.0
    %v227 = vmax.f32 %v223, 0.0
    %v228 = vpack.c.bf16 %v227, %v226
    %v229 = vld [vmem:[%s5] sm:$0xf]
    %v230 = vld [vmem:[%s5 + $0x4] sm:$0xf]
    %v231 = vld [vmem:[%s5 + $0x8] sm:$0xf]
    %v232 = vld [vmem:[%s5 + $0xc] sm:$0xf]
    %v233 = vld [vmem:[%s5 + $0x10] sm:$0xf]
    %v234 = vld [vmem:[%s5 + $0x14] sm:$0xf]
    %v235 = vld [vmem:[%s5 + $0x18] sm:$0xf]
    %v236 = vld [vmem:[%s5 + $0x1c] sm:$0xf]
    %v237 = vld [vmem:[%s5 + $0x20] sm:$0xf]
    %v238 = vld [vmem:[%s5 + $0x24] sm:$0xf]
    %v239 = vld [vmem:[%s5 + $0x28] sm:$0xf]
    %v240 = vld [vmem:[%s5 + $0x2c] sm:$0xf]
    %v241 = vld [vmem:[%s5 + $0x30] sm:$0xf]
    %v242 = vld [vmem:[%s5 + $0x34] sm:$0xf]
    %v243 = vld [vmem:[%s5 + $0x38] sm:$0xf]
    %v244 = vld [vmem:[%s5 + $0x3c] sm:$0xf]
    %v245 = vld [vmem:[#allocation4] sm:$0x1]
    %v247 = vlaneseq
    %v248 = vshrl.u32 %v247, 7
    %v249 = vsub.s32 0, %v248
    %v250 = vrot.slane %v245, %v249
    %v268 = vunpack.c.l.b16 %v229
    %v269 = vunpack.c.l.b16 %v230
    %v270 = vunpack.c.l.b16 %v231
    %v271 = vunpack.c.l.b16 %v232
    %v272 = vunpack.c.l.b16 %v233
    %v273 = vunpack.c.l.b16 %v234
    %v274 = vunpack.c.l.b16 %v235
    %v275 = vunpack.c.l.b16 %v236
    %v276 = vunpack.c.l.b16 %v237
    %v277 = vunpack.c.l.b16 %v238
    %v278 = vunpack.c.l.b16 %v239
    %v279 = vunpack.c.l.b16 %v240
    %v280 = vunpack.c.l.b16 %v241
    %v281 = vunpack.c.l.b16 %v242
    %v282 = vunpack.c.l.b16 %v243
    %v283 = vunpack.c.l.b16 %v244
    %v284 = vpack.c.b16 %v269, %v268
    %v285 = vpack.c.b16 %v271, %v270
    %v286 = vpack.c.b16 %v273, %v272
    %v287 = vpack.c.b16 %v275, %v274
    %v288 = vpack.c.b16 %v277, %v276
    %v289 = vpack.c.b16 %v279, %v278
    %v290 = vpack.c.b16 %v281, %v280
    %v291 = vpack.c.b16 %v283, %v282
    %300 = vmatprep.subr.bf16.mxu0 0
    %301 = vmatpush1.bf16.msra.mxu0 %v291
    %302 = vmatprep.subr.bf16.mxu0 0
    %303 = vmatpush1.bf16.msra.mxu0 %v290
    %304 = vmatprep.subr.bf16.mxu0 0
    %305 = vmatpush1.bf16.msra.mxu0 %v289
    %306 = vmatprep.subr.bf16.mxu0 0
    %307 = vmatpush1.bf16.msra.mxu0 %v288
    %308 = vmatprep.subr.bf16.mxu0 0
    %309 = vmatpush1.bf16.msra.mxu0 %v287
    %310 = vmatprep.subr.bf16.mxu0 0
    %311 = vmatpush1.bf16.msra.mxu0 %v286
    %312 = vmatprep.subr.bf16.mxu0 0
    %313 = vmatpush1.bf16.msra.mxu0 %v285
    %314 = vmatprep.subr.bf16.mxu0 0
    %315 = vmatpush1.bf16.msra.mxu0 %v284
    %316 = vmatprep.subr.bf16.mxu0 0
    %317 = vmatpush2.bf16.msra.mxu0 0
    %318 = vmatprep.subr.bf16.mxu0 0
    %319 = vmatpush2.bf16.msra.mxu0 0
    %320 = vmatprep.subr.bf16.mxu0 0
    %321 = vmatpush2.bf16.msra.mxu0 0
    %322 = vmatprep.subr.bf16.mxu0 0
    %323 = vmatpush2.bf16.msra.mxu0 0
    %324 = vmatprep.subr.bf16.mxu0 0
    %325 = vmatpush2.bf16.msra.mxu0 0
    %326 = vmatprep.subr.bf16.mxu0 0
    %327 = vmatpush2.bf16.msra.mxu0 0
    %328 = vmatprep.subr.bf16.mxu0 0
    %329 = vmatpush2.bf16.msra.mxu0 0
    %330 = vmatprep.subr.bf16.mxu0 0
    %331 = vmatpush2.bf16.msra.mxu0 0
    %332 = vmatprep.mubr.bf16.mxu0 0
    %333 = vmatmul.mubr.bf16.gmra.mxu0 %v228
    %v334 = vpop.f32.mrf.mxu0
    %v335 = vadd.f32 %v250, %v334
    %v336 = vpop.f32.mrf.mxu0
    %v337 = vpop.f32.mrf.mxu0
    %v338 = vadd.f32 %v250, %v337
    %v339 = vpop.f32.mrf.mxu0
    %340 = vdwg.mxu0
    %vm341 = vcmask 31744
    %342 = vst.msk [vmem:[#allocation6] sm:$0xff] %vm341, %v335
    %343 = vst.msk [vmem:[#allocation6 + $0x8] sm:$0xff] %vm341, %v338
    // Predicated region
    $region38: #{qnetwork_forward.1} parent=1 // pred_check
      _
    $region39: #{qnetwork_forward.1} parent=1 // pred_check_branch
      %345 = sbr.rel (0) target = $region41
    $region40: #{qnetwork_forward.1} parent=1 // pred_region
      // Predicated region
      $region42: #{qnetwork_forward.1} parent=40 // pred_check
        _
      $region43: #{qnetwork_forward.1} parent=40 // pred_check_branch
        %347 = sbr.rel (0) target = $region45
      $region44: #{qnetwork_forward.1} parent=40 // pred_region
        // Predicated region
        $region46: #{qnetwork_forward.1} parent=44 // pred_check
          _
        $region47: #{qnetwork_forward.1} parent=44 // pred_check_branch
          %349 = sbr.rel (0) target = $region49
        $region48: #{qnetwork_forward.1} parent=44 // pred_region
          // Predicated region
          $region61: #{qnetwork_forward.1} parent=48 // pred_check
            _
          $region62: #{qnetwork_forward.1} parent=48 // pred_check_branch
            %365 = sbr.rel (0) target = $region64
          $region63: #{qnetwork_forward.1} parent=48 // pred_region
            loop: start=0, step=1, limit=1
            $region65: #{qnetwork_forward.1} parent=63 // loop_pre_header
              _
            $region66: #{qnetwork_forward.1} parent=63 // loop_header
              %s367 = sphi 0, %s371
              %p368 = scmp.ge.s32.totalorder %s367, 1
              %s372 = sphi [#allocation6], [#allocation6]
              %s373 = sphi %s7, %s7
            $region67: #{qnetwork_forward.1} parent=63 // loop_header_branch
              %370 = sbr.rel (%p368) target = $region71
            $region68: #{qnetwork_forward.1} parent=63 // loop_body
              %v374 = vld [vmem:[%s372] sm:$0xff]
              %375 = vst [vmem:[%s373] sm:$0xff] %v374
            $region69: #{qnetwork_forward.1} parent=63 // loop_footer
              %s371 = sadd.s32 1, %s367
            $region70: #{qnetwork_forward.1} parent=63 // loop_footer_branch
              %366 = sbr.rel target = $region66
            $region71: #{qnetwork_forward.1} parent=63 // loop_exit
              _
          $region64: #{qnetwork_forward.1} parent=48 // pred_fallthru
            _
          // Predicated region
          $region72: #{qnetwork_forward.1} parent=48 // pred_check
            _
          $region73: #{qnetwork_forward.1} parent=48 // pred_check_branch
            %377 = sbr.rel target = $region75
          $region74: #{qnetwork_forward.1} parent=48 // pred_region
            _
          $region75: #{qnetwork_forward.1} parent=48 // pred_fallthru
            _
        $region49: #{qnetwork_forward.1} parent=44 // pred_fallthru
          _
        // Predicated region
        $region50: #{qnetwork_forward.1} parent=44 // pred_check
          _
        $region51: #{qnetwork_forward.1} parent=44 // pred_check_branch
          %351 = sbr.rel target = $region53
        $region52: #{qnetwork_forward.1} parent=44 // pred_region
          %s353 = ssub.s32 256, 1
          loop: start=0, step=1, limit=1
          $region54: #{qnetwork_forward.1} parent=52 // loop_pre_header
            _
          $region55: #{qnetwork_forward.1} parent=52 // loop_header
            %s355 = sphi 0, %s359
            %p356 = scmp.ge.s32.totalorder %s355, 1
            %s360 = sphi [#allocation6], [#allocation6]
            %s361 = sphi %s7, %s7
          $region56: #{qnetwork_forward.1} parent=52 // loop_header_branch
            %358 = sbr.rel (%p356) target = $region60
          $region57: #{qnetwork_forward.1} parent=52 // loop_body
            %v362 = vld [vmem:[%s360] sm:%s353]
            %363 = vst [vmem:[%s361] sm:%s353] %v362
          $region58: #{qnetwork_forward.1} parent=52 // loop_footer
            %s359 = sadd.s32 1, %s355
          $region59: #{qnetwork_forward.1} parent=52 // loop_footer_branch
            %354 = sbr.rel target = $region55
          $region60: #{qnetwork_forward.1} parent=52 // loop_exit
            _
        $region53: #{qnetwork_forward.1} parent=44 // pred_fallthru
          _
      $region45: #{qnetwork_forward.1} parent=40 // pred_fallthru
        _
      %378 = vnop
    $region41: #{qnetwork_forward.1} parent=1 // pred_fallthru
      _
    // Predicated region
    $region76: #{qnetwork_forward.1} parent=1 // pred_check
      _
    $region77: #{qnetwork_forward.1} parent=1 // pred_check_branch
      %380 = sbr.rel (0) target = $region79
    $region78: #{qnetwork_forward.1} parent=1 // pred_region
      _
    $region79: #{qnetwork_forward.1} parent=1 // pred_fallthru
      _
    %381 = vsyncpa [#allocation3], 1
    %382 = vsyncpa [#allocation5], 1

</llo_original>
